<compile_context>
chip_gen: v5e
topology: v5e:2x2
jax: 0.10.0
libtpu: 0.0.40
codegen_flags: <defaults>
</compile_context>

<pallas_src>
import functools

import jax
import jax.numpy as jnp
from jax.experimental import pallas as pl
from jax.experimental.pallas import tpu as pltpu


# --------------------------------------------------------------------------
# Generation-aware VMEM budgeting
# --------------------------------------------------------------------------
def _vmem_config():
    """Derive (tile budget, scoped-VMEM limit, max T tile) from the chip.

    budget ~= capacity/3 (pipelined 2-buf in + 2-buf out slabs), limit ~= 3/4
    of capacity.  v5e/v6e: 128 MiB -> ~42/96 MiB; v7x per-TC: 64 MiB -> ~21/48.
    """
    cap = 64 * 1024 * 1024
    try:
        cap = int(getattr(pltpu.get_tpu_info(), "vmem_capacity_bytes", cap)) or cap
    except Exception:  # fall back to the conservative 64 MiB assumption
        pass
    budget = cap // 3
    limit = (3 * cap) // 4
    t_tile_max = 1024 if cap >= 96 * 1024 * 1024 else 512
    return budget, limit, t_tile_max


# --------------------------------------------------------------------------
# Kernels
# --------------------------------------------------------------------------
def _se_fused_kernel(x_ref, w1t_ref, b1_ref, w2t_ref, b2_ref, o_ref, *, inv_t):
    """Fused path, one batch tile of (bt, C, T): pool -> tiny MLP -> scale."""
    x = x_ref[...]                                               # native dtype
    y = jnp.sum(x, axis=-1, dtype=jnp.float32) * inv_t           # (bt, C) f32
    h = jnp.dot(y, w1t_ref[...], preferred_element_type=jnp.float32) + b1_ref[...]
    h = jnp.maximum(h, 0.0)
    s = jax.nn.sigmoid(
        jnp.dot(h, w2t_ref[...], preferred_element_type=jnp.float32) + b2_ref[...])
    if x.dtype == jnp.float32:
        o_ref[...] = x * s[:, :, None]
    else:
        # Multiply in f32 then cast (matches the PyTorch reference rounding).
        o_ref[...] = (x.astype(jnp.float32) * s[:, :, None]).astype(o_ref.dtype)


def _se_fused_flat_kernel(x_ref, pool_ref, bcast_ref, w1t_ref, b1_ref,
                          w2t_ref, b2_ref, o_ref):
    """Lane-dense fused path on the flattened (bt, C*T) layout.

    pool_ref:  (C*T, C) 0/(1/T) matrix  -> per-channel mean via MXU.
    bcast_ref: (C, C*T) 0/1 matrix      -> gate repeated T times along lanes.
    """
    x = x_ref[...]                                               # (bt, C*T)
    y = jnp.dot(x, pool_ref[...], preferred_element_type=jnp.float32)   # (bt, C)
    h = jnp.dot(y, w1t_ref[...], preferred_element_type=jnp.float32) + b1_ref[...]
    h = jnp.maximum(h, 0.0)
    s = jax.nn.sigmoid(
        jnp.dot(h, w2t_ref[...], preferred_element_type=jnp.float32) + b2_ref[...])
    g = jnp.dot(s, bcast_ref[...], preferred_element_type=jnp.float32)  # (bt, C*T)
    if x.dtype == jnp.float32:
        o_ref[...] = x * g
    else:
        o_ref[...] = (x.astype(jnp.float32) * g).astype(o_ref.dtype)


def _se_pool_gate_kernel(x_ref, w1t_ref, b1_ref, w2t_ref, b2_ref, g_ref, acc_ref,
                         *, inv_t, t_total, t_tile):
    """Two-pass path, pass 1: accumulate pooled sum over T tiles, emit gate."""
    t = pl.program_id(1)
    nt = pl.num_programs(1)

    @pl.when(t == 0)
    def _():
        acc_ref[...] = jnp.zeros_like(acc_ref)

    if t_total % t_tile != 0:
        # Ragged tail: the iota/compare/select filler only runs on the last tile.
        @pl.when(t < nt - 1)
        def _():
            acc_ref[...] += jnp.sum(x_ref[...], axis=-1, dtype=jnp.float32)

        @pl.when(t == nt - 1)
        def _():
            x = x_ref[...]
            lane = jax.lax.broadcasted_iota(jnp.int32, x.shape, dimension=2)
            x = jnp.where(t * t_tile + lane < t_total, x, jnp.zeros_like(x))
            acc_ref[...] += jnp.sum(x, axis=-1, dtype=jnp.float32)
    else:
        acc_ref[...] += jnp.sum(x_ref[...], axis=-1, dtype=jnp.float32)

    @pl.when(t == nt - 1)
    def _():
        y = acc_ref[...] * inv_t
        h = jnp.dot(y, w1t_ref[...], preferred_element_type=jnp.float32) + b1_ref[...]
        h = jnp.maximum(h, 0.0)
        s = jax.nn.sigmoid(
            jnp.dot(h, w2t_ref[...], preferred_element_type=jnp.float32) + b2_ref[...])
        g_ref[...] = s[:, :, None]                               # (bt, C, 1) f32


def _se_scale_kernel(g_ref, x_ref, o_ref):
    """Two-pass path, pass 2: out = x * gate (gate broadcast over T)."""
    x = x_ref[...]
    g = g_ref[...]                                               # (bt, C, 1) f32
    if x.dtype == jnp.float32:
        o_ref[...] = x * g
    else:
        o_ref[...] = (x.astype(jnp.float32) * g).astype(o_ref.dtype)


# --------------------------------------------------------------------------
# Tiling helpers
# --------------------------------------------------------------------------
def _pick_batch_tile(batch, row_bytes, budget):
    """Batch tile for the 3-D layouts (leading dim, no sublane constraint).

    Picks the number of grid steps first so the tile divides B evenly (no
    ragged tile), keeps >= 2 steps so input/output DMA overlaps compute, and
    prefers an even step count (both v7x TensorCores get equal work).
    Returns 0 if even a single batch row does not fit `budget`.
    """
    bt_max = int(budget // (4 * row_bytes))           # 2 bufs in + 2 bufs out
    if bt_max < 1:
        return 0
    bt_max = min(bt_max, batch)
    nb_min = max(2, int(pl.cdiv(batch, bt_max)))
    if batch < nb_min:                                # batch == 1
        return bt_max
    for want_even in (True, False):
        for nb in range(nb_min, batch + 1):
            if want_even and nb % 2:
                continue
            if batch % nb == 0:
                return batch // nb
    return max(1, batch // nb_min)


def _pick_flat_batch_tile(batch, row_bytes, budget):
    """Batch tile for the flattened 2-D (B, C*T) layout.

    Here the batch tile is the second-minor dim of the block, so it must be a
    multiple of 8 or equal to B (the (8,128) rule).  For tiny batches a single
    lane-dense step beats ragged multi-step pipelining.
    """
    bt_max = int(budget // (4 * row_bytes))
    if bt_max < 1:
        return 0
    if batch <= 8 or bt_max < 8:
        return batch if bt_max >= batch else 0
    bt = min((bt_max // 8) * 8, max(8, ((batch // 2) // 8) * 8))
    while bt > 8 and batch % bt:
        bt -= 8
    return bt


def _maybe_buffered_spec(shape, index_map, buffers):
    """BlockSpec with pipeline_mode=Buffered(n); fall back if unsupported."""
    try:
        return pl.BlockSpec(shape, index_map, pipeline_mode=pl.Buffered(buffers))
    except Exception:
        return pl.BlockSpec(shape, index_map)


# --------------------------------------------------------------------------
# Wrapper
# --------------------------------------------------------------------------
def se_block_forward(x, w1, b1, w2, b2, *, force_two_pass=False):
    """SEBlock forward.

    x: (B, C, T); w1: (H, C); b1: (H,); w2: (C, H); b2: (C,)
    (PyTorch nn.Linear weight layout, H = C // reduction).
    """
    B, C, T = x.shape
    H = w1.shape[0]
    itemsize = jnp.dtype(x.dtype).itemsize
    budget, vmem_limit, t_tile_max = _vmem_config()

    # Glue (not the hot path): transpose weights, reshape biases.
    w1t = jnp.transpose(w1)            # (C, H)
    w2t = jnp.transpose(w2)            # (H, C)
    b1r = b1.reshape(1, H)
    b2r = b2.reshape(1, C)
    weight_bytes = int((2 * C * H + C + H) * 4)
    row_bytes = C * T * itemsize

    # ---- Lane-dense flattened fused path (small / non-aligned T) ------------
    flat_mat_bytes = 2 * (C * T) * C * 4               # pool + bcast matrices
    use_flat = (not force_two_pass
                and T % 128 != 0
                and (C * T) % 128 == 0
                and flat_mat_bytes <= 4 * 1024 * 1024)
    if use_flat:
        bt = _pick_flat_batch_tile(B, row_bytes,
                                   max(0, budget - 2 * flat_mat_bytes))
        if bt > 0:
            nb = int(pl.cdiv(B, bt))
            x2 = x.reshape(B, C * T)
            rows = jnp.arange(C * T, dtype=jnp.int32)[:, None] // T
            cols = jnp.arange(C, dtype=jnp.int32)[None, :]
            eye_ct = (rows == cols).astype(jnp.float32)          # (C*T, C)
            pool_mat = eye_ct * (1.0 / T)
            bcast_mat = jnp.transpose(eye_ct)                    # (C, C*T)
            out2 = pl.pallas_call(
                _se_fused_flat_kernel,
                out_shape=jax.ShapeDtypeStruct((B, C * T), x.dtype),
                grid=(nb,),
                in_specs=[
                    pl.BlockSpec((bt, C * T), lambda b: (b, 0)),
                    pl.BlockSpec((C * T, C), lambda b: (0, 0)),  # resident
                    pl.BlockSpec((C, C * T), lambda b: (0, 0)),  # resident
                    pl.BlockSpec((C, H), lambda b: (0, 0)),
                    pl.BlockSpec((1, H), lambda b: (0, 0)),
                    pl.BlockSpec((H, C), lambda b: (0, 0)),
                    pl.BlockSpec((1, C), lambda b: (0, 0)),
                ],
                out_specs=pl.BlockSpec((bt, C * T), lambda b: (b, 0)),
                compiler_params=pltpu.CompilerParams(
                    dimension_semantics=("parallel",),
                    vmem_limit_bytes=vmem_limit),
                cost_estimate=pl.CostEstimate(
                    flops=int(4 * B * C * C * T + 4 * B * C * H + 2 * B * C * T),
                    transcendentals=int(B * C),
                    bytes_accessed=int(2 * B * C * T * itemsize
                                       + weight_bytes + flat_mat_bytes)),
            )(x2, pool_mat, bcast_mat, w1t, b1r, w2t, b2r)
            return out2.reshape(B, C, T)

    # ---- Fused single-pass 3-D path (T lane-aligned or flat path unusable) --
    bt = 0 if force_two_pass else _pick_batch_tile(B, row_bytes, budget)
    if bt > 0:
        nb = int(pl.cdiv(B, bt))
        kernel = functools.partial(_se_fused_kernel, inv_t=1.0 / T)
        return pl.pallas_call(
            kernel,
            out_shape=jax.ShapeDtypeStruct((B, C, T), x.dtype),
            grid=(nb,),
            in_specs=[
                pl.BlockSpec((bt, C, T), lambda b: (b, 0, 0)),
                pl.BlockSpec((C, H), lambda b: (0, 0)),          # resident
                pl.BlockSpec((1, H), lambda b: (0, 0)),
                pl.BlockSpec((H, C), lambda b: (0, 0)),
                pl.BlockSpec((1, C), lambda b: (0, 0)),
            ],
            out_specs=pl.BlockSpec((bt, C, T), lambda b: (b, 0, 0)),
            compiler_params=pltpu.CompilerParams(
                dimension_semantics=("parallel",),
                vmem_limit_bytes=vmem_limit),
            cost_estimate=pl.CostEstimate(
                flops=int(4 * B * C * H + 2 * B * C * T),
                transcendentals=int(B * C),
                bytes_accessed=int(2 * B * C * T * itemsize + weight_bytes)),
        )(x, w1t, b1r, w2t, b2r)

    # ---- Two-pass path: tile T as well (long sequences / big C*T) -----------
    t_tile = min(T, t_tile_max)
    bt = _pick_batch_tile(B, C * t_tile * itemsize, budget)
    while bt == 0 and t_tile > 128:
        t_tile = max(128, ((t_tile // 2) // 128) * 128)
        bt = _pick_batch_tile(B, C * t_tile * itemsize, budget)
    bt = max(1, bt)
    nb = int(pl.cdiv(B, bt))
    nt = int(pl.cdiv(T, t_tile))

    pool_kernel = functools.partial(
        _se_pool_gate_kernel, inv_t=1.0 / T, t_total=T, t_tile=t_tile)

    # Pass 1: pooled mean + excitation MLP -> per-(batch, channel) gate.
    gate = pl.pallas_call(
        pool_kernel,
        out_shape=jax.ShapeDtypeStruct((B, C, 1), jnp.float32),
        grid=(nb, nt),                                 # reduction axis (T) last
        in_specs=[
            pl.BlockSpec((bt, C, t_tile), lambda b, t: (b, 0, t)),
            pl.BlockSpec((C, H), lambda b, t: (0, 0)),
            pl.BlockSpec((1, H), lambda b, t: (0, 0)),
            pl.BlockSpec((H, C), lambda b, t: (0, 0)),
            pl.BlockSpec((1, C), lambda b, t: (0, 0)),
        ],
        out_specs=pl.BlockSpec((bt, C, 1), lambda b, t: (b, 0, 0)),
        scratch_shapes=[pltpu.VMEM((bt, C), jnp.float32)],
        compiler_params=pltpu.CompilerParams(
            dimension_semantics=("parallel", "arbitrary"),
            vmem_limit_bytes=vmem_limit),
        cost_estimate=pl.CostEstimate(
            flops=int(B * C * T + 4 * B * C * H),
            transcendentals=int(B * C),
            bytes_accessed=int(B * C * T * itemsize + B * C * 4 + weight_bytes)),
    )(x, w1t, b1r, w2t, b2r)

    # Pass 2: re-read x tiles and scale by the resident gate (pure streaming).
    def _pass2(x_spec):
        return pl.pallas_call(
            _se_scale_kernel,
            out_shape=jax.ShapeDtypeStruct((B, C, T), x.dtype),
            grid=(nb, nt),
            in_specs=[
                pl.BlockSpec((bt, C, 1), lambda b, t: (b, 0, 0)),
                x_spec,
            ],
            out_specs=pl.BlockSpec((bt, C, t_tile), lambda b, t: (b, 0, t)),
            compiler_params=pltpu.CompilerParams(
                dimension_semantics=("parallel", "parallel"),
                vmem_limit_bytes=vmem_limit),
            cost_estimate=pl.CostEstimate(
                flops=int(B * C * T),
                transcendentals=0,
                bytes_accessed=int(2 * B * C * T * itemsize + B * C * 4)),
        )(gate, x)

    try:
        return _pass2(_maybe_buffered_spec((bt, C, t_tile),
                                           lambda b, t: (b, 0, t), 3))
    except Exception:
        return _pass2(pl.BlockSpec((bt, C, t_tile), lambda b, t: (b, 0, t)))


def se_block_ref(x, w1, b1, w2, b2):
    """Pure-JAX reference mirroring the PyTorch forward."""
    y = jnp.mean(x.astype(jnp.float32), axis=-1)       # (B, C)
    h = jnp.maximum(y @ w1.T + b1, 0.0)                # (B, H)
    s = jax.nn.sigmoid(h @ w2.T + b2)                  # (B, C)
    return (x.astype(jnp.float32) * s[:, :, None]).astype(x.dtype)


if __name__ == "__main__":
    key = jax.random.PRNGKey(0)
    kx1, kx2, kx3, k1, k2, k3, k4 = jax.random.split(key, 7)

    # SE parameters (PyTorch nn.Linear weight layout: (out, in)).
    C, reduction = 32, 8
    H = C // reduction
    w1 = 0.1 * jax.random.normal(k1, (H, C), dtype=jnp.float32)
    b1 = 0.1 * jax.random.normal(k2, (H,), dtype=jnp.float32)
    w2 = 0.1 * jax.random.normal(k3, (C, H), dtype=jnp.float32)
    b2 = 0.1 * jax.random.normal(k4, (C,), dtype=jnp.float32)

    # Case 1: small, non-128-aligned T -> lane-dense flattened fused path.
    x1 = jax.random.normal(kx1, (2, C, 16), dtype=jnp.float32)
    o1 = jax.block_until_ready(se_block_forward(x1, w1, b1, w2, b2))
    r1 = se_block_ref(x1, w1, b1, w2, b2)
    assert o1.shape == x1.shape
    assert jnp.allclose(o1, r1, atol=1e-4, rtol=1e-4), "flattened fused mismatch"

    # Case 2: 128-aligned T -> 3-D fused single-pass path.
    x2 = jax.random.normal(kx2, (4, C, 128), dtype=jnp.float32)
    o2 = jax.block_until_ready(se_block_forward(x2, w1, b1, w2, b2))
    r2 = se_block_ref(x2, w1, b1, w2, b2)
    assert o2.shape == x2.shape
    assert jnp.allclose(o2, r2, atol=1e-4, rtol=1e-4), "fused path mismatch"

    # Case 3: long T with a ragged T tail -> two-pass (T-tiled) path.
    x3 = jax.random.normal(kx3, (4, C, 1152), dtype=jnp.float32)
    o3 = jax.block_until_ready(
        se_block_forward(x3, w1, b1, w2, b2, force_two_pass=True))
    r3 = se_block_ref(x3, w1, b1, w2, b2)
    assert o3.shape == x3.shape
    assert jnp.allclose(o3, r3, atol=1e-4, rtol=1e-4), "two-pass path mismatch"

    print("KERNEL_OK")
</pallas_src>

<mosaic_0001>
module attributes {stable_mosaic.version = 11 : i64} {
  func.func @_se_fused_flat_kernel(%arg0: i32, %arg1: memref<2x512xf32, #tpu.memory_space<vmem>>, %arg2: memref<512x32xf32, #tpu.memory_space<vmem>>, %arg3: memref<32x512xf32, #tpu.memory_space<vmem>>, %arg4: memref<32x4xf32, #tpu.memory_space<vmem>>, %arg5: memref<1x4xf32, #tpu.memory_space<vmem>>, %arg6: memref<4x32xf32, #tpu.memory_space<vmem>>, %arg7: memref<1x32xf32, #tpu.memory_space<vmem>>, %arg8: memref<2x512xf32, #tpu.memory_space<vmem>>) attributes {dimension_semantics = [#tpu.dimension_semantics<parallel>], iteration_bounds = array<i64: 1>, scalar_prefetch = 0 : i64, scratch_operands = 0 : i64, tpu.core_type = #tpu.core_type<tc>, window_params = [{transform_indices = @transform_0, window_bounds = array<i64: 2, 512>}, {pipeline_mode = #tpu.pipeline_mode<synchronous>, transform_indices = @transform_1, window_bounds = array<i64: 512, 32>}, {pipeline_mode = #tpu.pipeline_mode<synchronous>, transform_indices = @transform_2, window_bounds = array<i64: 32, 512>}, {pipeline_mode = #tpu.pipeline_mode<synchronous>, transform_indices = @transform_3, window_bounds = array<i64: 32, 4>}, {pipeline_mode = #tpu.pipeline_mode<synchronous>, transform_indices = @transform_4, window_bounds = array<i64: 1, 4>}, {pipeline_mode = #tpu.pipeline_mode<synchronous>, transform_indices = @transform_5, window_bounds = array<i64: 4, 32>}, {pipeline_mode = #tpu.pipeline_mode<synchronous>, transform_indices = @transform_6, window_bounds = array<i64: 1, 32>}, {transform_indices = @transform_7, window_bounds = array<i64: 2, 512>}]} {
    %c0 = arith.constant 0 : index
    %c0_0 = arith.constant 0 : index
    %0 = vector.load %arg1[%c0, %c0_0] : memref<2x512xf32, #tpu.memory_space<vmem>>, vector<2x512xf32>
    %c0_1 = arith.constant 0 : index
    %c0_2 = arith.constant 0 : index
    %1 = vector.load %arg2[%c0_1, %c0_2] : memref<512x32xf32, #tpu.memory_space<vmem>>, vector<512x32xf32>
    %cst = arith.constant dense<0.000000e+00> : vector<2x32xf32>
    %2 = tpu.matmul %0, %1, %cst {dimension_numbers = #tpu.dot_dimension_numbers<[1], [0], [0], [1], [0, 0, 1, 1], [], []>} : vector<2x512xf32>, vector<512x32xf32>, vector<2x32xf32> -> vector<2x32xf32>
    %c0_3 = arith.constant 0 : index
    %c0_4 = arith.constant 0 : index
    %3 = vector.load %arg4[%c0_3, %c0_4] : memref<32x4xf32, #tpu.memory_space<vmem>>, vector<32x4xf32>
    %cst_5 = arith.constant dense<0.000000e+00> : vector<2x4xf32>
    %4 = tpu.matmul %2, %3, %cst_5 {dimension_numbers = #tpu.dot_dimension_numbers<[1], [0], [0], [1], [0, 0, 1, 1], [], []>} : vector<2x32xf32>, vector<32x4xf32>, vector<2x4xf32> -> vector<2x4xf32>
    %c0_6 = arith.constant 0 : index
    %c0_7 = arith.constant 0 : index
    %5 = vector.load %arg5[%c0_6, %c0_7] : memref<1x4xf32, #tpu.memory_space<vmem>>, vector<1x4xf32>
    %6 = vector.broadcast %5 : vector<1x4xf32> to vector<2x4xf32>
    %7 = arith.addf %4, %6 : vector<2x4xf32>
    %cst_8 = arith.constant 0.000000e+00 : f32
    %8 = vector.broadcast %cst_8 : f32 to vector<2x4xf32>
    %9 = arith.maximumf %7, %8 : vector<2x4xf32>
    %c0_9 = arith.constant 0 : index
    %c0_10 = arith.constant 0 : index
    %10 = vector.load %arg6[%c0_9, %c0_10] : memref<4x32xf32, #tpu.memory_space<vmem>>, vector<4x32xf32>
    %cst_11 = arith.constant dense<0.000000e+00> : vector<2x32xf32>
    %11 = tpu.matmul %9, %10, %cst_11 {dimension_numbers = #tpu.dot_dimension_numbers<[1], [0], [0], [1], [0, 0, 1, 1], [], []>} : vector<2x4xf32>, vector<4x32xf32>, vector<2x32xf32> -> vector<2x32xf32>
    %c0_12 = arith.constant 0 : index
    %c0_13 = arith.constant 0 : index
    %12 = vector.load %arg7[%c0_12, %c0_13] : memref<1x32xf32, #tpu.memory_space<vmem>>, vector<1x32xf32>
    %13 = vector.broadcast %12 : vector<1x32xf32> to vector<2x32xf32>
    %14 = arith.addf %11, %13 : vector<2x32xf32>
    %15 = arith.negf %14 : vector<2x32xf32>
    %16 = math.exp %15 : vector<2x32xf32>
    %cst_14 = arith.constant 1.000000e+00 : f32
    %17 = vector.broadcast %cst_14 : f32 to vector<2x32xf32>
    %18 = arith.addf %17, %16 : vector<2x32xf32>
    %19 = arith.divf %17, %18 : vector<2x32xf32>
    %c0_15 = arith.constant 0 : index
    %c0_16 = arith.constant 0 : index
    %20 = vector.load %arg3[%c0_15, %c0_16] : memref<32x512xf32, #tpu.memory_space<vmem>>, vector<32x512xf32>
    %cst_17 = arith.constant dense<0.000000e+00> : vector<2x512xf32>
    %21 = tpu.matmul %19, %20, %cst_17 {dimension_numbers = #tpu.dot_dimension_numbers<[1], [0], [0], [1], [0, 0, 1, 1], [], []>} : vector<2x32xf32>, vector<32x512xf32>, vector<2x512xf32> -> vector<2x512xf32>
    %22 = arith.mulf %0, %21 : vector<2x512xf32>
    %c0_18 = arith.constant 0 : index
    %c0_19 = arith.constant 0 : index
    %23 = vector.load %arg8[%c0_18, %c0_19] : memref<2x512xf32, #tpu.memory_space<vmem>>, vector<2x512xf32>
    tpu.vector_store %arg8[%c0_18, %c0_19], %22 {strides = array<i32>} : memref<2x512xf32, #tpu.memory_space<vmem>>, vector<2x512xf32>,
    return
  }
  func.func @transform_0(%arg0: i32) -> (i32, i32) {
    %c0_i32 = arith.constant 0 : i32
    %c0_i32_0 = arith.constant 0 : i32
    return %arg0, %c0_i32 : i32, i32
  }
  func.func @transform_1(%arg0: i32) -> (i32, i32) {
    %c0_i32 = arith.constant 0 : i32
    %c0_i32_0 = arith.constant 0 : i32
    %c0_i32_1 = arith.constant 0 : i32
    return %c0_i32, %c0_i32_0 : i32, i32
  }
  func.func @transform_2(%arg0: i32) -> (i32, i32) {
    %c0_i32 = arith.constant 0 : i32
    %c0_i32_0 = arith.constant 0 : i32
    %c0_i32_1 = arith.constant 0 : i32
    return %c0_i32, %c0_i32_0 : i32, i32
  }
  func.func @transform_3(%arg0: i32) -> (i32, i32) {
    %c0_i32 = arith.constant 0 : i32
    %c0_i32_0 = arith.constant 0 : i32
    %c0_i32_1 = arith.constant 0 : i32
    return %c0_i32, %c0_i32_0 : i32, i32
  }
  func.func @transform_4(%arg0: i32) -> (i32, i32) {
    %c0_i32 = arith.constant 0 : i32
    %c0_i32_0 = arith.constant 0 : i32
    %c0_i32_1 = arith.constant 0 : i32
    return %c0_i32, %c0_i32_0 : i32, i32
  }
  func.func @transform_5(%arg0: i32) -> (i32, i32) {
    %c0_i32 = arith.constant 0 : i32
    %c0_i32_0 = arith.constant 0 : i32
    %c0_i32_1 = arith.constant 0 : i32
    return %c0_i32, %c0_i32_0 : i32, i32
  }
  func.func @transform_6(%arg0: i32) -> (i32, i32) {
    %c0_i32 = arith.constant 0 : i32
    %c0_i32_0 = arith.constant 0 : i32
    %c0_i32_1 = arith.constant 0 : i32
    return %c0_i32, %c0_i32_0 : i32, i32
  }
  func.func @transform_7(%arg0: i32) -> (i32, i32) {
    %c0_i32 = arith.constant 0 : i32
    %c0_i32_0 = arith.constant 0 : i32
    return %arg0, %c0_i32 : i32, i32
  }
}

</mosaic_0001>

<llo_original>
// kernel: tpu_custom_call.1
$region0: #{tpu_custom_call.1}
  #allocation0 [shape = 'u32[]', space=smem, size = 0x4, offset = 0x4, fixed_abs, tag = 'smem constant byte address 0x4 - core index']
  #allocation1 [shape = 'u32[72,128]{1,0:T(1,128)}', space=vmem, size = 0x9000, scoped, tag = 'internal scratch']
  %s0 = inlined_call_operand.vmem [shape: f32[2,512], index: 0, kind: input, shape index: {}]
  %s1 = inlined_call_operand.vmem [shape: f32[512,32], index: 1, kind: input, shape index: {}]
  %s2 = inlined_call_operand.vmem [shape: f32[32,512], index: 2, kind: input, shape index: {}]
  %s3 = inlined_call_operand.vmem [shape: f32[32,4], index: 3, kind: input, shape index: {}]
  %s4 = inlined_call_operand.vmem [shape: f32[1,4], index: 4, kind: input, shape index: {}]
  %s5 = inlined_call_operand.vmem [shape: f32[4,32], index: 5, kind: input, shape index: {}]
  %s6 = inlined_call_operand.vmem [shape: f32[1,32], index: 6, kind: input, shape index: {}]
  %s7 = inlined_call_operand.hbm [shape: f32[2,512], index: 7, kind: output, shape index: {}]
  %s8 = sld [smem:[#allocation0]]
  $region38: #{tpu_custom_call.1} parent=0
    _
  %s10 = ssub.s32 1, %s8
  %s11 = scalar_select 0, %s10, %s8
  $region1: #{tpu_custom_call.1} parent=0
    #allocation2 [shape = 'u8[4096]{0}', space=vmem, size = 0x1000, scoped, tag = 'output window, operand 0, single buffered']
    #allocation3 [shape = 's32[1]{0}', space=sflag, size = 0x4, scoped, tag = 'scoped memory for tpu_custom_call.1']
    %12 = vsyncpa [#allocation3], 0
    // Predicated region
    $region2: #{tpu_custom_call.1} parent=1 // pred_check
      _
    $region3: #{tpu_custom_call.1} parent=1 // pred_check_branch
      %14 = sbr.rel (0) target = $region5
    $region4: #{tpu_custom_call.1} parent=1 // pred_region
      _
    $region5: #{tpu_custom_call.1} parent=1 // pred_fallthru
      _
    // Predicated region
    $region6: #{tpu_custom_call.1} parent=1 // pred_check
      _
    $region7: #{tpu_custom_call.1} parent=1 // pred_check_branch
      %16 = sbr.rel (0) target = $region9
    $region8: #{tpu_custom_call.1} parent=1 // pred_region
      _
    $region9: #{tpu_custom_call.1} parent=1 // pred_fallthru
      _
    // Predicated region
    $region10: #{tpu_custom_call.1} parent=1 // pred_check
      _
    $region11: #{tpu_custom_call.1} parent=1 // pred_check_branch
      %18 = sbr.rel (0) target = $region13
    $region12: #{tpu_custom_call.1} parent=1 // pred_region
      _
    $region13: #{tpu_custom_call.1} parent=1 // pred_fallthru
      _
    // Predicated region
    $region14: #{tpu_custom_call.1} parent=1 // pred_check
      _
    $region15: #{tpu_custom_call.1} parent=1 // pred_check_branch
      %20 = sbr.rel (0) target = $region17
    $region16: #{tpu_custom_call.1} parent=1 // pred_region
      _
    $region17: #{tpu_custom_call.1} parent=1 // pred_fallthru
      _
    // Predicated region
    $region18: #{tpu_custom_call.1} parent=1 // pred_check
      _
    $region19: #{tpu_custom_call.1} parent=1 // pred_check_branch
      %22 = sbr.rel (0) target = $region21
    $region20: #{tpu_custom_call.1} parent=1 // pred_region
      _
    $region21: #{tpu_custom_call.1} parent=1 // pred_fallthru
      _
    // Predicated region
    $region22: #{tpu_custom_call.1} parent=1 // pred_check
      _
    $region23: #{tpu_custom_call.1} parent=1 // pred_check_branch
      %24 = sbr.rel (0) target = $region25
    $region24: #{tpu_custom_call.1} parent=1 // pred_region
      _
    $region25: #{tpu_custom_call.1} parent=1 // pred_fallthru
      _
    // Predicated region
    $region26: #{tpu_custom_call.1} parent=1 // pred_check
      _
    $region27: #{tpu_custom_call.1} parent=1 // pred_check_branch
      %26 = sbr.rel (0) target = $region29
    $region28: #{tpu_custom_call.1} parent=1 // pred_region
      _
    $region29: #{tpu_custom_call.1} parent=1 // pred_fallthru
      _
    %v27 = vld [vmem:[%s0] sm:$0xff]
    %v28 = vld [vmem:[%s1] sm:$0xff]
    %v29 = vld [vmem:[%s1 + $0x8] sm:$0xff]
    %v30 = vld [vmem:[%s1 + $0x10] sm:$0xff]
    %v31 = vld [vmem:[%s1 + $0x18] sm:$0xff]
    %v32 = vld [vmem:[%s1 + $0x20] sm:$0xff]
    %v33 = vld [vmem:[%s1 + $0x28] sm:$0xff]
    %v34 = vld [vmem:[%s1 + $0x30] sm:$0xff]
    %v35 = vld [vmem:[%s1 + $0x38] sm:$0xff]
    %v36 = vld [vmem:[%s1 + $0x40] sm:$0xff]
    %v37 = vld [vmem:[%s1 + $0x48] sm:$0xff]
    %v38 = vld [vmem:[%s1 + $0x50] sm:$0xff]
    %v39 = vld [vmem:[%s1 + $0x58] sm:$0xff]
    %v40 = vld [vmem:[%s1 + $0x60] sm:$0xff]
    %v41 = vld [vmem:[%s1 + $0x68] sm:$0xff]
    %v42 = vld [vmem:[%s1 + $0x70] sm:$0xff]
    %v43 = vld [vmem:[%s1 + $0x78] sm:$0xff]
    %v44 = vld [vmem:[%s1 + $0x80] sm:$0xff]
    %v45 = vld [vmem:[%s1 + $0x88] sm:$0xff]
    %v46 = vld [vmem:[%s1 + $0x90] sm:$0xff]
    %v47 = vld [vmem:[%s1 + $0x98] sm:$0xff]
    %v48 = vld [vmem:[%s1 + $0xa0] sm:$0xff]
    %v49 = vld [vmem:[%s1 + $0xa8] sm:$0xff]
    %v50 = vld [vmem:[%s1 + $0xb0] sm:$0xff]
    %v51 = vld [vmem:[%s1 + $0xb8] sm:$0xff]
    %v52 = vld [vmem:[%s1 + $0xc0] sm:$0xff]
    %v53 = vld [vmem:[%s1 + $0xc8] sm:$0xff]
    %v54 = vld [vmem:[%s1 + $0xd0] sm:$0xff]
    %v55 = vld [vmem:[%s1 + $0xd8] sm:$0xff]
    %v56 = vld [vmem:[%s1 + $0xe0] sm:$0xff]
    %v57 = vld [vmem:[%s1 + $0xe8] sm:$0xff]
    %v58 = vld [vmem:[%s1 + $0xf0] sm:$0xff]
    %v59 = vld [vmem:[%s1 + $0xf8] sm:$0xff]
    %v60 = vld [vmem:[%s1 + $0x100] sm:$0xff]
    %v61 = vld [vmem:[%s1 + $0x108] sm:$0xff]
    %v62 = vld [vmem:[%s1 + $0x110] sm:$0xff]
    %v63 = vld [vmem:[%s1 + $0x118] sm:$0xff]
    %v64 = vld [vmem:[%s1 + $0x120] sm:$0xff]
    %v65 = vld [vmem:[%s1 + $0x128] sm:$0xff]
    %v66 = vld [vmem:[%s1 + $0x130] sm:$0xff]
    %v67 = vld [vmem:[%s1 + $0x138] sm:$0xff]
    %v68 = vld [vmem:[%s1 + $0x140] sm:$0xff]
    %v69 = vld [vmem:[%s1 + $0x148] sm:$0xff]
    %v70 = vld [vmem:[%s1 + $0x150] sm:$0xff]
    %v71 = vld [vmem:[%s1 + $0x158] sm:$0xff]
    %v72 = vld [vmem:[%s1 + $0x160] sm:$0xff]
    %v73 = vld [vmem:[%s1 + $0x168] sm:$0xff]
    %v74 = vld [vmem:[%s1 + $0x170] sm:$0xff]
    %v75 = vld [vmem:[%s1 + $0x178] sm:$0xff]
    %v76 = vld [vmem:[%s1 + $0x180] sm:$0xff]
    %v77 = vld [vmem:[%s1 + $0x188] sm:$0xff]
    %v78 = vld [vmem:[%s1 + $0x190] sm:$0xff]
    %v79 = vld [vmem:[%s1 + $0x198] sm:$0xff]
    %v80 = vld [vmem:[%s1 + $0x1a0] sm:$0xff]
    %v81 = vld [vmem:[%s1 + $0x1a8] sm:$0xff]
    %v82 = vld [vmem:[%s1 + $0x1b0] sm:$0xff]
    %v83 = vld [vmem:[%s1 + $0x1b8] sm:$0xff]
    %v84 = vld [vmem:[%s1 + $0x1c0] sm:$0xff]
    %v85 = vld [vmem:[%s1 + $0x1c8] sm:$0xff]
    %v86 = vld [vmem:[%s1 + $0x1d0] sm:$0xff]
    %v87 = vld [vmem:[%s1 + $0x1d8] sm:$0xff]
    %v88 = vld [vmem:[%s1 + $0x1e0] sm:$0xff]
    %v89 = vld [vmem:[%s1 + $0x1e8] sm:$0xff]
    %v90 = vld [vmem:[%s1 + $0x1f0] sm:$0xff]
    %v91 = vld [vmem:[%s1 + $0x1f8] sm:$0xff]
    %93 = vst [vmem:[#allocation1] ss:$4 sm:$0xff] %v27
    %v94 = vld.sshfl [vmem:[#allocation1] sm:$0xff pattern:$0x73625140]
    %v95 = vld.sshfl [vmem:[#allocation1 + $0x8] sm:$0xff pattern:$0x73625140]
    %v96 = vld.sshfl [vmem:[#allocation1 + $0x10] sm:$0xff pattern:$0x73625140]
    %v97 = vld.sshfl [vmem:[#allocation1 + $0x18] sm:$0xff pattern:$0x73625140]
    %102 = vmatpush.msra.mxu0 %v43
    %103 = vmatpush.msra.mxu0 %v42
    %104 = vmatpush.msra.mxu0 %v41
    %105 = vmatpush.msra.mxu0 %v40
    %106 = vmatpush.msra.mxu0 %v39
    %107 = vmatpush.msra.mxu0 %v38
    %108 = vmatpush.msra.mxu0 %v37
    %109 = vmatpush.msra.mxu0 %v36
    %110 = vmatpush.msra.mxu0 %v35
    %111 = vmatpush.msra.mxu0 %v34
    %112 = vmatpush.msra.mxu0 %v33
    %113 = vmatpush.msra.mxu0 %v32
    %114 = vmatpush.msra.mxu0 %v31
    %115 = vmatpush.msra.mxu0 %v30
    %116 = vmatpush.msra.mxu0 %v29
    %117 = vmatpush.msra.mxu0 %v28
    %118 = vmatmul.f32.gmra.mxu0 %v94
    %v119 = vpop.f32.mrf.mxu0
    %v120 = vadd.f32 0.0, %v119
    %121 = vdwg.mxu0
    %122 = vmatpush.msra.mxu0 %v59
    %123 = vmatpush.msra.mxu0 %v58
    %124 = vmatpush.msra.mxu0 %v57
    %125 = vmatpush.msra.mxu0 %v56
    %126 = vmatpush.msra.mxu0 %v55
    %127 = vmatpush.msra.mxu0 %v54
    %128 = vmatpush.msra.mxu0 %v53
    %129 = vmatpush.msra.mxu0 %v52
    %130 = vmatpush.msra.mxu0 %v51
    %131 = vmatpush.msra.mxu0 %v50
    %132 = vmatpush.msra.mxu0 %v49
    %133 = vmatpush.msra.mxu0 %v48
    %134 = vmatpush.msra.mxu0 %v47
    %135 = vmatpush.msra.mxu0 %v46
    %136 = vmatpush.msra.mxu0 %v45
    %137 = vmatpush.msra.mxu0 %v44
    %138 = vmatmul.f32.gmra.mxu0 %v95
    %v139 = vpop.f32.mrf.mxu0
    %v140 = vadd.f32 %v120, %v139
    %141 = vdwg.mxu0
    %142 = vmatpush.msra.mxu0 %v75
    %143 = vmatpush.msra.mxu0 %v74
    %144 = vmatpush.msra.mxu0 %v73
    %145 = vmatpush.msra.mxu0 %v72
    %146 = vmatpush.msra.mxu0 %v71
    %147 = vmatpush.msra.mxu0 %v70
    %148 = vmatpush.msra.mxu0 %v69
    %149 = vmatpush.msra.mxu0 %v68
    %150 = vmatpush.msra.mxu0 %v67
    %151 = vmatpush.msra.mxu0 %v66
    %152 = vmatpush.msra.mxu0 %v65
    %153 = vmatpush.msra.mxu0 %v64
    %154 = vmatpush.msra.mxu0 %v63
    %155 = vmatpush.msra.mxu0 %v62
    %156 = vmatpush.msra.mxu0 %v61
    %157 = vmatpush.msra.mxu0 %v60
    %158 = vmatmul.f32.gmra.mxu0 %v96
    %v159 = vpop.f32.mrf.mxu0
    %v160 = vadd.f32 %v140, %v159
    %161 = vdwg.mxu0
    %162 = vmatpush.msra.mxu0 %v91
    %163 = vmatpush.msra.mxu0 %v90
    %164 = vmatpush.msra.mxu0 %v89
    %165 = vmatpush.msra.mxu0 %v88
    %166 = vmatpush.msra.mxu0 %v87
    %167 = vmatpush.msra.mxu0 %v86
    %168 = vmatpush.msra.mxu0 %v85
    %169 = vmatpush.msra.mxu0 %v84
    %170 = vmatpush.msra.mxu0 %v83
    %171 = vmatpush.msra.mxu0 %v82
    %172 = vmatpush.msra.mxu0 %v81
    %173 = vmatpush.msra.mxu0 %v80
    %174 = vmatpush.msra.mxu0 %v79
    %175 = vmatpush.msra.mxu0 %v78
    %176 = vmatpush.msra.mxu0 %v77
    %177 = vmatpush.msra.mxu0 %v76
    %178 = vmatmul.f32.gmra.mxu0 %v97
    %v179 = vpop.f32.mrf.mxu0
    %v180 = vadd.f32 %v160, %v179
    %181 = vdwg.mxu0
    %v182 = vld [vmem:[%s3] sm:$0xff]
    %v183 = vld [vmem:[%s3 + $0x8] sm:$0xff]
    %v184 = vld [vmem:[%s3 + $0x10] sm:$0xff]
    %v185 = vld [vmem:[%s3 + $0x18] sm:$0xff]
    %v186 = vld [vmem:[%s4] sm:$0x1]
    %v188 = vperm.slane %v186, 0
    %vm190 = vcmask 261120
    %v192 = vsel %vm190, %v180, 0
    %194 = vmatpush.msra.mxu0 0.0
    %195 = vmatpush.msra.mxu0 0.0
    %196 = vmatpush.msra.mxu0 0.0
    %197 = vmatpush.msra.mxu0 0.0
    %198 = vmatpush.msra.mxu0 0.0
    %199 = vmatpush.msra.mxu0 0.0
    %200 = vmatpush.msra.mxu0 0.0
    %201 = vmatpush.msra.mxu0 0.0
    %202 = vmatpush.msra.mxu0 0.0
    %203 = vmatpush.msra.mxu0 0.0
    %204 = vmatpush.msra.mxu0 0.0
    %205 = vmatpush.msra.mxu0 0.0
    %206 = vmatpush.msra.mxu0 %v185
    %207 = vmatpush.msra.mxu0 %v184
    %208 = vmatpush.msra.mxu0 %v183
    %209 = vmatpush.msra.mxu0 %v182
    %210 = vmatmul.f32.gmra.mxu0 %v192
    %v211 = vpop.f32.mrf.mxu0
    %v212 = vadd.f32 %v188, %v211
    %213 = vdwg.mxu0
    %v214 = vmax.f32 %v212, 0.0
    %v215 = vld [vmem:[%s5] sm:$0xf]
    %v216 = vld [vmem:[%s6] sm:$0x1]
    %v218 = vperm.slane %v216, 0
    %vm220 = vcmask 31744
    %v222 = vsel %vm220, %v214, 0
    %vm224 = vcmask 1043456
    %v226 = vsel %vm224, %v215, 0
    %228 = vmatpush.msra.mxu0 0.0
    %229 = vmatpush.msra.mxu0 0.0
    %230 = vmatpush.msra.mxu0 0.0
    %231 = vmatpush.msra.mxu0 0.0
    %232 = vmatpush.msra.mxu0 0.0
    %233 = vmatpush.msra.mxu0 0.0
    %234 = vmatpush.msra.mxu0 0.0
    %235 = vmatpush.msra.mxu0 0.0
    %236 = vmatpush.msra.mxu0 0.0
    %237 = vmatpush.msra.mxu0 0.0
    %238 = vmatpush.msra.mxu0 0.0
    %239 = vmatpush.msra.mxu0 0.0
    %240 = vmatpush.msra.mxu0 0.0
    %241 = vmatpush.msra.mxu0 0.0
    %242 = vmatpush.msra.mxu0 0.0
    %243 = vmatpush.msra.mxu0 %v226
    %244 = vmatmul.f32.gmra.mxu0 %v222
    %v245 = vpop.f32.mrf.mxu0
    %v246 = vadd.f32 %v218, %v245
    %247 = vdwg.mxu0
    %v248 = vxor.u32 %v246, 2147483648
    %v249 = vmul.f32 %v248, 1.442695
    %v250 = vpow.pop %v249
    %v251 = vadd.f32 %v250, 1.0
    %v252 = vrcp.pop %v251
    %v253 = vmul.f32 %v251, %v252
    %v254 = vsub.f32 1.0, %v253
    %v255 = vmul.f32 %v252, %v254
    %v256 = vadd.f32 %v252, %v255
    %vm257 = vweird.f32 %v251
    %vm258 = vweird.f32 %v252
    %vm259 = vmor %vm257, %vm258
    %v260 = vsel %vm259, %v252, %v256
    %v261 = vand.u32 2147483647, %v251
    %vm262 = vcmp.eq.f32.partialorder %v261, 8.507059e+37
    %v263 = vand.u32 %v251, 2147483648
    %v264 = vor.u32 1.1754944e-38, %v263
    %v265 = vsel %vm262, %v264, %v260
    %v266 = vmul.f32 1.0, %v265
    %v267 = vld [vmem:[%s2] sm:$0xff]
    %v268 = vld [vmem:[%s2 + $0x8] sm:$0xff]
    %v269 = vld [vmem:[%s2 + $0x10] sm:$0xff]
    %v270 = vld [vmem:[%s2 + $0x18] sm:$0xff]
    %v271 = vld [vmem:[%s2 + $0x20] sm:$0xff]
    %v272 = vld [vmem:[%s2 + $0x28] sm:$0xff]
    %v273 = vld [vmem:[%s2 + $0x30] sm:$0xff]
    %v274 = vld [vmem:[%s2 + $0x38] sm:$0xff]
    %v275 = vld [vmem:[%s2 + $0x40] sm:$0xff]
    %v276 = vld [vmem:[%s2 + $0x48] sm:$0xff]
    %v277 = vld [vmem:[%s2 + $0x50] sm:$0xff]
    %v278 = vld [vmem:[%s2 + $0x58] sm:$0xff]
    %v279 = vld [vmem:[%s2 + $0x60] sm:$0xff]
    %v280 = vld [vmem:[%s2 + $0x68] sm:$0xff]
    %v281 = vld [vmem:[%s2 + $0x70] sm:$0xff]
    %v282 = vld [vmem:[%s2 + $0x78] sm:$0xff]
    %v284 = vsel %vm190, %v266, 0
    %286 = vmatpush.msra.mxu0 0.0
    %287 = vmatpush.msra.mxu0 0.0
    %288 = vmatpush.msra.mxu0 0.0
    %289 = vmatpush.msra.mxu0 0.0
    %290 = vmatpush.msra.mxu0 0.0
    %291 = vmatpush.msra.mxu0 0.0
    %292 = vmatpush.msra.mxu0 0.0
    %293 = vmatpush.msra.mxu0 0.0
    %294 = vmatpush.msra.mxu0 0.0
    %295 = vmatpush.msra.mxu0 0.0
    %296 = vmatpush.msra.mxu0 0.0
    %297 = vmatpush.msra.mxu0 0.0
    %298 = vmatpush.msra.mxu0 %v279
    %299 = vmatpush.msra.mxu0 %v275
    %300 = vmatpush.msra.mxu0 %v271
    %301 = vmatpush.msra.mxu0 %v267
    %302 = vmatmul.f32.gmra.mxu0 %v284
    %v303 = vpop.f32.mrf.mxu0
    %v304 = vadd.f32 0.0, %v303
    %305 = vdwg.mxu0
    %306 = vmatpush.msra.mxu0 0.0
    %307 = vmatpush.msra.mxu0 0.0
    %308 = vmatpush.msra.mxu0 0.0
    %309 = vmatpush.msra.mxu0 0.0
    %310 = vmatpush.msra.mxu0 0.0
    %311 = vmatpush.msra.mxu0 0.0
    %312 = vmatpush.msra.mxu0 0.0
    %313 = vmatpush.msra.mxu0 0.0
    %314 = vmatpush.msra.mxu0 0.0
    %315 = vmatpush.msra.mxu0 0.0
    %316 = vmatpush.msra.mxu0 0.0
    %317 = vmatpush.msra.mxu0 0.0
    %318 = vmatpush.msra.mxu0 %v280
    %319 = vmatpush.msra.mxu0 %v276
    %320 = vmatpush.msra.mxu0 %v272
    %321 = vmatpush.msra.mxu0 %v268
    %322 = vmatmul.f32.gmra.mxu0 %v284
    %v323 = vpop.f32.mrf.mxu0
    %v324 = vadd.f32 0.0, %v323
    %325 = vdwg.mxu0
    %326 = vmatpush.msra.mxu0 0.0
    %327 = vmatpush.msra.mxu0 0.0
    %328 = vmatpush.msra.mxu0 0.0
    %329 = vmatpush.msra.mxu0 0.0
    %330 = vmatpush.msra.mxu0 0.0
    %331 = vmatpush.msra.mxu0 0.0
    %332 = vmatpush.msra.mxu0 0.0
    %333 = vmatpush.msra.mxu0 0.0
    %334 = vmatpush.msra.mxu0 0.0
    %335 = vmatpush.msra.mxu0 0.0
    %336 = vmatpush.msra.mxu0 0.0
    %337 = vmatpush.msra.mxu0 0.0
    %338 = vmatpush.msra.mxu0 %v281
    %339 = vmatpush.msra.mxu0 %v277
    %340 = vmatpush.msra.mxu0 %v273
    %341 = vmatpush.msra.mxu0 %v269
    %342 = vmatmul.f32.gmra.mxu0 %v284
    %v343 = vpop.f32.mrf.mxu0
    %v344 = vadd.f32 0.0, %v343
    %345 = vdwg.mxu0
    %346 = vmatpush.msra.mxu0 0.0
    %347 = vmatpush.msra.mxu0 0.0
    %348 = vmatpush.msra.mxu0 0.0
    %349 = vmatpush.msra.mxu0 0.0
    %350 = vmatpush.msra.mxu0 0.0
    %351 = vmatpush.msra.mxu0 0.0
    %352 = vmatpush.msra.mxu0 0.0
    %353 = vmatpush.msra.mxu0 0.0
    %354 = vmatpush.msra.mxu0 0.0
    %355 = vmatpush.msra.mxu0 0.0
    %356 = vmatpush.msra.mxu0 0.0
    %357 = vmatpush.msra.mxu0 0.0
    %358 = vmatpush.msra.mxu0 %v282
    %359 = vmatpush.msra.mxu0 %v278
    %360 = vmatpush.msra.mxu0 %v274
    %361 = vmatpush.msra.mxu0 %v270
    %362 = vmatmul.f32.gmra.mxu0 %v284
    %v363 = vpop.f32.mrf.mxu0
    %v364 = vadd.f32 0.0, %v363
    %365 = vdwg.mxu0
    %v370 = vrot.slane %v324, 6
    %v371 = vrot.slane %v344, 4
    %v372 = vrot.slane %v364, 2
    %vm373 = vcmask 1041408
    %v374 = vsel %vm373, %v304, %v370
    %vm375 = vcmask 1045508
    %v376 = vsel %vm375, %v371, %v372
    %v377 = vsel %vm224, %v374, %v376
    %v379 = vmul.f32 %v27, %v377
    %380 = vst [vmem:[#allocation2] sm:$0xff] %v379
    // Predicated region
    $region30: #{tpu_custom_call.1} parent=1 // pred_check
      _
    $region31: #{tpu_custom_call.1} parent=1 // pred_check_branch
      %382 = sbr.rel (0) target = $region33
    $region32: #{tpu_custom_call.1} parent=1 // pred_region
      %384 = vsyncadd [#allocation3], 0
      %s386 = sshll.u32 [#allocation2], 4
      %s387 = int_to_ptr.vmem [resolvable:$true] %s386
      %s388 = sshll.u32 %s7, 4
      %s389 = int_to_ptr.hbm [resolvable:$true] %s388
      %391 = dma.vmem_to_hbm [thread:$0]  %s387, 128, %s389, [#allocation3]
    $region33: #{tpu_custom_call.1} parent=1 // pred_fallthru
      _
    // Predicated region
    $region34: #{tpu_custom_call.1} parent=1 // pred_check
      _
    $region35: #{tpu_custom_call.1} parent=1 // pred_check_branch
      %393 = sbr.rel (0) target = $region37
    $region36: #{tpu_custom_call.1} parent=1 // pred_region
      %395 = dma.done [#allocation3], 128
    $region37: #{tpu_custom_call.1} parent=1 // pred_fallthru
      _
    %396 = vsyncpa [#allocation3], 1

</llo_original>
